<compile_context>
chip_gen: v6e
topology: v6e:2x2x1
jax: 0.10.0
libtpu: 0.0.40
codegen_flags: <defaults>
</compile_context>

<pallas_src>
import functools

import jax
import jax.numpy as jnp
from jax import lax
from jax.experimental import pallas as pl
from jax.experimental.pallas import tpu as pltpu


_TARGET_BLOCK_BYTES = 2 << 20     # ~2 MiB blocks: ~85% of HBM roofline, cheap to double-buffer
_FUSED_BLOCK_BYTES = 4 << 20      # max per-channel-slab block for the fused single-pass path
_FUSED_VMEM_CAP = 48 << 20        # conservative fused-path estimate cap (< v7x's 64 MiB physical)
_TWO_PASS_VMEM_BYTES = 40 << 20   # explicit: v5e's default scoped VMEM is only 16 MiB


def _valid_channel_tiles(C):
    """Channel tiles honoring the (8,128) rule on the second-to-last block dim
    (multiple of 8, or the full channel dim), descending."""
    tiles = {d for d in range(8, C + 1, 8) if C % d == 0}
    tiles.add(C)
    return sorted(tiles, reverse=True)


def _valid_hw_tiles(hw):
    """H*W tiles honoring the (8,128) rule on the last block dim
    (multiple of 128, or the full spatial dim), descending."""
    tiles = {d for d in range(128, hw + 1, 128) if hw % d == 0}
    tiles.add(hw)
    return sorted(tiles, reverse=True)


def _divisors_desc(n):
    return [d for d in range(n, 0, -1) if n % d == 0]


def _choose_fused_tile(N, C, hw, itemsize, block_budget):
    """Largest channel tile whose full per-channel slab (N, tc, hw) fits the fused
    (VMEM-resident) budget; prefer >= 2 channel tiles so both v7x cores get work."""
    for prefer_two_tiles in (True, False):
        for tc in _valid_channel_tiles(C):
            if prefer_two_tiles and C // tc < 2:
                continue
            blk = N * tc * hw * itemsize
            # Conservative: double-buffered in+out blocks plus ~4 f32 temporaries.
            est = 4 * blk + 4 * (N * tc * hw) * 4 + (2 << 20)
            if blk <= block_budget and est <= _FUSED_VMEM_CAP:
                return tc, est
    return None, None


def _choose_two_pass_tiles(N, C, hw, itemsize, target=_TARGET_BLOCK_BYTES):
    """Pick (nb, tc, thw) block dims sized by bytes (~target)."""
    tcs = _valid_channel_tiles(C)
    thws = _valid_hw_tiles(hw)
    tc_min = tcs[-1]

    # Tile H*W only when even the minimal channel tile would blow the budget
    # (small-C / huge-spatial inputs) -- keeps double-buffered blocks VMEM-safe.
    if tc_min * hw * itemsize <= target:
        thw = hw
    else:
        fit = [d for d in thws if tc_min * d * itemsize <= target]
        thw = max(fit) if fit else min(thws)   # best effort if hw has no /128 divisor

    # Channel tile: largest under budget; prefer >= 2 tiles so the stats pass's
    # "parallel" axis can shard across both v7x TensorCores.
    fit = [d for d in tcs if d * thw * itemsize <= target]
    if fit:
        two_core = [d for d in fit if C // d >= 2]
        tc = max(two_core) if two_core else max(fit)
    else:
        tc = tc_min

    # Grow the block along the batch axis toward the byte target (late ResNet
    # stages have tiny H*W; channel tiling alone leaves overhead-dominated blocks).
    nb = next((d for d in _divisors_desc(N) if d * tc * thw * itemsize <= target), 1)
    return nb, tc, thw


# ---------------------------------------------------------------------------
# Fused single-pass kernel: per-channel slab resident in VMEM.
# ---------------------------------------------------------------------------
def _fused_kernel(x_ref, gamma_ref, beta_ref, y_ref, mean_ref, var_ref, *, eps):
    # x_ref / y_ref: (N, tc, hw).  The whole reduction domain for these channels
    # is resident, so use the numerically safe two-pass (centered) variance and
    # normalize from the same copy: 1 HBM read + 1 HBM write of x total.
    x = x_ref[...].astype(jnp.float32)
    n, _, hw = x.shape
    inv_count = 1.0 / float(n * hw)

    row_sum = jnp.sum(x, axis=-1, keepdims=True)            # (N, tc, 1) lane reduce
    mean = jnp.sum(row_sum, axis=0) * inv_count              # (tc, 1)
    centered = x - mean[None, :, :]
    row_sq = jnp.sum(centered * centered, axis=-1, keepdims=True)
    var = jnp.sum(row_sq, axis=0) * inv_count                 # (tc, 1), biased

    scale = gamma_ref[...] * lax.rsqrt(var + eps)              # (tc, 1)
    y = centered * scale[None, :, :] + beta_ref[...][None, :, :]
    y_ref[...] = y.astype(y_ref.dtype)
    mean_ref[...] = mean
    var_ref[...] = var


# ---------------------------------------------------------------------------
# Two-pass fallback kernels.
# ---------------------------------------------------------------------------
def _stats_kernel(x_ref, sum_ref, sumsq_ref, shift_ref):
    # x_ref: (nb, tc, thw).  Grid = (C_tiles, N_tiles, HW_tiles); axes 1, 2 reduce.
    first = (pl.program_id(1) == 0) & (pl.program_id(2) == 0)
    x = x_ref[...].astype(jnp.float32)
    nb, _, thw = x.shape

    @pl.when(first)
    def _():
        # Per-channel shift taken from the first block (~= the channel mean):
        # accumulating *centered* sums keeps E[x^2] - mean^2 in the glue from
        # catastrophically cancelling when |mean| >> std.
        blk_sum = jnp.sum(jnp.sum(x, axis=-1, keepdims=True), axis=0)   # (tc, 1)
        shift_ref[...] = blk_sum * (1.0 / float(nb * thw))
        sum_ref[...] = jnp.zeros_like(sum_ref)
        sumsq_ref[...] = jnp.zeros_like(sumsq_ref)

    xc = x - shift_ref[...][None, :, :]
    # TODO(synk): if HBM stops being the binding unit (v7x), accumulate into a
    # (tc, 128)-wide f32 scratch with plain VPU adds and do the cross-lane reduce
    # + masked (tc, 1) store only once on the last reduction step.
    sum_ref[...] += jnp.sum(jnp.sum(xc, axis=-1, keepdims=True), axis=0)
    sumsq_ref[...] += jnp.sum(jnp.sum(xc * xc, axis=-1, keepdims=True), axis=0)


def _normalize_kernel(x_ref, scale_ref, shift_ref, o_ref):
    # x_ref / o_ref: (nb, tc, thw); scale/shift: (tc, 1) f32 precomputed in glue.
    # TODO(synk): on v6e/v7x a bf16 input could keep this FMA in bf16 (halves
    # vreg pressure); kept in f32 so the identical kernel is exact on v5e.
    x = x_ref[...].astype(jnp.float32)
    y = x * scale_ref[...][None, :, :] + shift_ref[...][None, :, :]
    o_ref[...] = y.astype(o_ref.dtype)


def batch_norm(x, gamma, beta, eps=1e-5, *,
               max_fused_block_bytes=_FUSED_BLOCK_BYTES):
    """Training-mode BatchNorm2d forward.

    x: (N, C, H, W); gamma, beta: (1, C, 1, 1).
    Returns (y, batch_mean, batch_var); batch_var is the *biased* variance
    (divide by N*H*W), exactly what the PyTorch module normalizes with.
    """
    N, C, H, W = x.shape
    hw = H * W
    itemsize = jnp.dtype(x.dtype).itemsize
    x3 = x.reshape(N, C, hw)                       # free contiguous reshape (NCHW)
    gamma_c = gamma.reshape(C, 1).astype(jnp.float32)
    beta_c = beta.reshape(C, 1).astype(jnp.float32)
    count = float(N * hw)

    # ---- fused single-pass path: whole (N, tc, hw) slab resident in VMEM ----
    tc_f, vmem_est = _choose_fused_tile(N, C, hw, itemsize, max_fused_block_bytes)
    if tc_f is not None:
        y3, mean, var = pl.pallas_call(
            functools.partial(_fused_kernel, eps=float(eps)),
            out_shape=(jax.ShapeDtypeStruct((N, C, hw), x.dtype),
                       jax.ShapeDtypeStruct((C, 1), jnp.float32),
                       jax.ShapeDtypeStruct((C, 1), jnp.float32)),
            grid_spec=pltpu.PrefetchScalarGridSpec(
                num_scalar_prefetch=0,
                grid=(C // tc_f,),
                in_specs=[pl.BlockSpec((N, tc_f, hw), lambda c: (0, c, 0)),
                          pl.BlockSpec((tc_f, 1), lambda c: (c, 0)),
                          pl.BlockSpec((tc_f, 1), lambda c: (c, 0))],
                out_specs=[pl.BlockSpec((N, tc_f, hw), lambda c: (0, c, 0)),
                           pl.BlockSpec((tc_f, 1), lambda c: (c, 0)),
                           pl.BlockSpec((tc_f, 1), lambda c: (c, 0))]),
            compiler_params=pltpu.CompilerParams(
                dimension_semantics=("parallel",),
                vmem_limit_bytes=max(32 << 20, int(vmem_est))),
            cost_estimate=pl.CostEstimate(
                flops=7 * x.size, transcendentals=C,
                bytes_accessed=2 * x.size * itemsize),
        )(x3, gamma_c, beta_c)
        return y3.reshape(N, C, H, W), mean.reshape(C), var.reshape(C)

    # ---- two-pass path: byte-sized (nb, tc, thw) blocks ----
    nb, tc, thw = _choose_two_pass_tiles(N, C, hw, itemsize)
    grid = (C // tc, N // nb, hw // thw)

    # pass 1: per-channel shifted sum / sum-of-squares over (N, H*W)
    sum_c, sumsq_c, shift_c = pl.pallas_call(
        _stats_kernel,
        out_shape=(jax.ShapeDtypeStruct((C, 1), jnp.float32),
                   jax.ShapeDtypeStruct((C, 1), jnp.float32),
                   jax.ShapeDtypeStruct((C, 1), jnp.float32)),
        grid_spec=pltpu.PrefetchScalarGridSpec(
            num_scalar_prefetch=0,
            grid=grid,
            in_specs=[pl.BlockSpec((nb, tc, thw), lambda c, n, h: (n, c, h))],
            out_specs=[pl.BlockSpec((tc, 1), lambda c, n, h: (c, 0)),
                       pl.BlockSpec((tc, 1), lambda c, n, h: (c, 0)),
                       pl.BlockSpec((tc, 1), lambda c, n, h: (c, 0))]),
        compiler_params=pltpu.CompilerParams(
            dimension_semantics=("parallel", "arbitrary", "arbitrary"),
            vmem_limit_bytes=_TWO_PASS_VMEM_BYTES),
        cost_estimate=pl.CostEstimate(
            flops=5 * x.size, transcendentals=0,
            bytes_accessed=x.size * itemsize),
    )(x3)

    # tiny O(C) glue: shifted sums -> biased variance -> fused scale/shift
    mean = shift_c + sum_c / count                                   # (C, 1)
    var = jnp.maximum(sumsq_c / count - jnp.square(sum_c / count), 0.0)
    inv = lax.rsqrt(var + jnp.float32(eps))
    scale = gamma_c * inv                                            # (C, 1)
    shift = beta_c - mean * scale                                    # (C, 1)

    # pass 2: y = x * scale + shift (elementwise, fully parallel grid)
    # TODO(synk): for hw not a multiple of 128 (7x7/14x14 stages) a lane-dense
    # variant (scale/shift pre-broadcast to (C, hw), x viewed as (N, C*hw)) would
    # avoid masked vst; skipped since the fused path already covers those stages.
    y3 = pl.pallas_call(
        _normalize_kernel,
        out_shape=jax.ShapeDtypeStruct((N, C, hw), x.dtype),
        grid_spec=pltpu.PrefetchScalarGridSpec(
            num_scalar_prefetch=0,
            grid=grid,
            in_specs=[pl.BlockSpec((nb, tc, thw), lambda c, n, h: (n, c, h)),
                      pl.BlockSpec((tc, 1), lambda c, n, h: (c, 0)),
                      pl.BlockSpec((tc, 1), lambda c, n, h: (c, 0))],
            out_specs=pl.BlockSpec((nb, tc, thw), lambda c, n, h: (n, c, h))),
        compiler_params=pltpu.CompilerParams(
            dimension_semantics=("parallel", "parallel", "parallel"),
            vmem_limit_bytes=_TWO_PASS_VMEM_BYTES),
        cost_estimate=pl.CostEstimate(
            flops=2 * x.size, transcendentals=0,
            bytes_accessed=2 * x.size * itemsize),
    )(x3, scale, shift)

    # TODO(synk): eval-mode forward (normalize with running stats) reuses
    # _normalize_kernel with scale/shift derived from running_mean/running_var;
    # the module's in-place buffer mutation is returned as values instead.
    return y3.reshape(N, C, H, W), mean.reshape(C), var.reshape(C)


def batch_norm_ref(x, gamma, beta, eps=1e-5):
    # Pure-JAX reference mirroring the PyTorch training forward (biased var).
    xf = x.astype(jnp.float32)
    mean = jnp.mean(xf, axis=(0, 2, 3), keepdims=True)
    var = jnp.var(xf, axis=(0, 2, 3), keepdims=True)   # unbiased=False
    y = (xf - mean) / jnp.sqrt(var + eps)
    return y * gamma + beta


if __name__ == "__main__":
    key = jax.random.PRNGKey(0)

    cases = [
        # (name, shape, wrapper kwargs)
        ("fused", (2, 4, 16, 16), {}),                                # fused path
        ("two_pass", (2, 4, 16, 16), {"max_fused_block_bytes": 0}),   # force 2-pass
        ("fused_hw49", (2, 16, 7, 7), {}),                            # hw % 128 != 0
        ("two_pass_hw49", (3, 16, 7, 7), {"max_fused_block_bytes": 0}),
    ]

    mean = var = None
    x = None
    for i, (name, shape, kwargs) in enumerate(cases):
        k = jax.random.fold_in(key, i)
        N, C, H, W = shape
        # +3.0 DC offset deliberately stresses the variance-cancellation path.
        x = jax.random.normal(k, shape, dtype=jnp.float32) + 3.0
        gamma = (1.0 + 0.1 * jax.random.normal(jax.random.fold_in(k, 1),
                                               (1, C, 1, 1))).astype(jnp.float32)
        beta = (0.1 * jax.random.normal(jax.random.fold_in(k, 2),
                                        (1, C, 1, 1))).astype(jnp.float32)

        y, mean, var = batch_norm(x, gamma, beta, eps=1e-5, **kwargs)
        y = jax.block_until_ready(y)

        ref = batch_norm_ref(x, gamma, beta, eps=1e-5)
        err = float(jnp.max(jnp.abs(y.astype(jnp.float32) - ref)))
        assert y.shape == shape, (name, y.shape)
        assert err < 1e-4, (name, err)

    # Running-stat side effect of the module's training path (buffers start at 0).
    momentum = 0.1
    n_per_chan = x.size / x.shape[1]
    running_mean = momentum * mean
    running_var = momentum * (n_per_chan / (n_per_chan - 1)) * var
    del running_mean, running_var

    print("KERNEL_OK")
</pallas_src>

<mosaic_0001>
module attributes {stable_mosaic.version = 11 : i64} {
  func.func @_fused_kernel(%arg0: i32, %arg1: memref<2x4x256xf32, #tpu.memory_space<vmem>>, %arg2: memref<4x1xf32, #tpu.memory_space<vmem>>, %arg3: memref<4x1xf32, #tpu.memory_space<vmem>>, %arg4: memref<2x4x256xf32, #tpu.memory_space<vmem>>, %arg5: memref<4x1xf32, #tpu.memory_space<vmem>>, %arg6: memref<4x1xf32, #tpu.memory_space<vmem>>) attributes {dimension_semantics = [#tpu.dimension_semantics<parallel>], iteration_bounds = array<i64: 1>, scalar_prefetch = 0 : i64, scratch_operands = 0 : i64, tpu.core_type = #tpu.core_type<tc>, window_params = [{transform_indices = @transform_0, window_bounds = array<i64: 2, 4, 256>}, {transform_indices = @transform_1, window_bounds = array<i64: 4, 1>}, {transform_indices = @transform_2, window_bounds = array<i64: 4, 1>}, {transform_indices = @transform_3, window_bounds = array<i64: 2, 4, 256>}, {transform_indices = @transform_4, window_bounds = array<i64: 4, 1>}, {transform_indices = @transform_5, window_bounds = array<i64: 4, 1>}]} {
    %c0 = arith.constant 0 : index
    %c0_0 = arith.constant 0 : index
    %c0_1 = arith.constant 0 : index
    %0 = vector.load %arg1[%c0, %c0_0, %c0_1] : memref<2x4x256xf32, #tpu.memory_space<vmem>>, vector<2x4x256xf32>
    %cst = arith.constant dense<0.000000e+00> : vector<2x4xf32>
    %1 = vector.multi_reduction <add>, %0, %cst [2] : vector<2x4x256xf32> to vector<2x4xf32>
    %2 = vector.shape_cast %1 : vector<2x4xf32> to vector<2x4x1xf32>
    %cst_2 = arith.constant dense<0.000000e+00> : vector<4x1xf32>
    %3 = vector.multi_reduction <add>, %2, %cst_2 [0] : vector<2x4x1xf32> to vector<4x1xf32>
    %cst_3 = arith.constant 0.001953125 : f32
    %4 = vector.broadcast %cst_3 : f32 to vector<4x1xf32>
    %5 = arith.mulf %3, %4 : vector<4x1xf32>
    %6 = vector.shape_cast %5 : vector<4x1xf32> to vector<1x4x1xf32>
    %7 = vector.broadcast %6 : vector<1x4x1xf32> to vector<2x4x256xf32>
    %8 = arith.subf %0, %7 : vector<2x4x256xf32>
    %9 = arith.mulf %8, %8 : vector<2x4x256xf32>
    %cst_4 = arith.constant dense<0.000000e+00> : vector<2x4xf32>
    %10 = vector.multi_reduction <add>, %9, %cst_4 [2] : vector<2x4x256xf32> to vector<2x4xf32>
    %11 = vector.shape_cast %10 : vector<2x4xf32> to vector<2x4x1xf32>
    %cst_5 = arith.constant dense<0.000000e+00> : vector<4x1xf32>
    %12 = vector.multi_reduction <add>, %11, %cst_5 [0] : vector<2x4x1xf32> to vector<4x1xf32>
    %cst_6 = arith.constant 0.001953125 : f32
    %13 = vector.broadcast %cst_6 : f32 to vector<4x1xf32>
    %14 = arith.mulf %12, %13 : vector<4x1xf32>
    %c0_7 = arith.constant 0 : index
    %c0_8 = arith.constant 0 : index
    %15 = vector.load %arg2[%c0_7, %c0_8] : memref<4x1xf32, #tpu.memory_space<vmem>>, vector<4x1xf32>
    %cst_9 = arith.constant 9.99999974E-6 : f32
    %16 = vector.broadcast %cst_9 : f32 to vector<4x1xf32>
    %17 = arith.addf %14, %16 : vector<4x1xf32>
    %18 = math.rsqrt %17 : vector<4x1xf32>
    %19 = arith.mulf %15, %18 : vector<4x1xf32>
    %20 = vector.shape_cast %19 : vector<4x1xf32> to vector<1x4x1xf32>
    %21 = vector.broadcast %20 : vector<1x4x1xf32> to vector<2x4x256xf32>
    %22 = arith.mulf %8, %21 : vector<2x4x256xf32>
    %c0_10 = arith.constant 0 : index
    %c0_11 = arith.constant 0 : index
    %23 = vector.load %arg3[%c0_10, %c0_11] : memref<4x1xf32, #tpu.memory_space<vmem>>, vector<4x1xf32>
    %24 = vector.shape_cast %23 : vector<4x1xf32> to vector<1x4x1xf32>
    %25 = vector.broadcast %24 : vector<1x4x1xf32> to vector<2x4x256xf32>
    %26 = arith.addf %22, %25 : vector<2x4x256xf32>
    %c0_12 = arith.constant 0 : index
    %c0_13 = arith.constant 0 : index
    %c0_14 = arith.constant 0 : index
    %27 = vector.load %arg4[%c0_12, %c0_13, %c0_14] : memref<2x4x256xf32, #tpu.memory_space<vmem>>, vector<2x4x256xf32>
    tpu.vector_store %arg4[%c0_12, %c0_13, %c0_14], %26 {strides = array<i32>} : memref<2x4x256xf32, #tpu.memory_space<vmem>>, vector<2x4x256xf32>,
    %c0_15 = arith.constant 0 : index
    %c0_16 = arith.constant 0 : index
    %28 = vector.load %arg5[%c0_15, %c0_16] : memref<4x1xf32, #tpu.memory_space<vmem>>, vector<4x1xf32>
    tpu.vector_store %arg5[%c0_15, %c0_16], %5 {strides = array<i32>} : memref<4x1xf32, #tpu.memory_space<vmem>>, vector<4x1xf32>,
    %c0_17 = arith.constant 0 : index
    %c0_18 = arith.constant 0 : index
    %29 = vector.load %arg6[%c0_17, %c0_18] : memref<4x1xf32, #tpu.memory_space<vmem>>, vector<4x1xf32>
    tpu.vector_store %arg6[%c0_17, %c0_18], %14 {strides = array<i32>} : memref<4x1xf32, #tpu.memory_space<vmem>>, vector<4x1xf32>,
    return
  }
  func.func @transform_0(%arg0: i32) -> (i32, i32, i32) {
    %c0_i32 = arith.constant 0 : i32
    %c0_i32_0 = arith.constant 0 : i32
    %c0_i32_1 = arith.constant 0 : i32
    return %c0_i32, %arg0, %c0_i32_0 : i32, i32, i32
  }
  func.func @transform_1(%arg0: i32) -> (i32, i32) {
    %c0_i32 = arith.constant 0 : i32
    %c0_i32_0 = arith.constant 0 : i32
    return %arg0, %c0_i32 : i32, i32
  }
  func.func @transform_2(%arg0: i32) -> (i32, i32) {
    %c0_i32 = arith.constant 0 : i32
    %c0_i32_0 = arith.constant 0 : i32
    return %arg0, %c0_i32 : i32, i32
  }
  func.func @transform_3(%arg0: i32) -> (i32, i32, i32) {
    %c0_i32 = arith.constant 0 : i32
    %c0_i32_0 = arith.constant 0 : i32
    %c0_i32_1 = arith.constant 0 : i32
    return %c0_i32, %arg0, %c0_i32_0 : i32, i32, i32
  }
  func.func @transform_4(%arg0: i32) -> (i32, i32) {
    %c0_i32 = arith.constant 0 : i32
    %c0_i32_0 = arith.constant 0 : i32
    return %arg0, %c0_i32 : i32, i32
  }
  func.func @transform_5(%arg0: i32) -> (i32, i32) {
    %c0_i32 = arith.constant 0 : i32
    %c0_i32_0 = arith.constant 0 : i32
    return %arg0, %c0_i32 : i32, i32
  }
}

</mosaic_0001>

<llo_original>
// kernel: tpu_custom_call.1
$region0: #{tpu_custom_call.1}
  #allocation0 [shape = 'u32[]', space=smem, size = 0x4, offset = 0x4, fixed_abs, tag = 'smem constant byte address 0x4 - core index']
  #allocation1 [shape = 'u32[144,128]{1,0:T(1,128)}', space=vmem, size = 0x12000, scoped, tag = 'internal scratch']
  %s0 = inlined_call_operand.hbm [shape: f32[2,4,256], index: 0, kind: input, shape index: {}]
  %s1 = inlined_call_operand.vmem [shape: f32[4,1], index: 1, kind: input, shape index: {}]
  %s2 = inlined_call_operand.vmem [shape: f32[4,1], index: 2, kind: input, shape index: {}]
  %s3 = inlined_call_operand.hbm [shape: f32[2,4,256], index: 3, kind: output, shape index: {0}]
  %s4 = inlined_call_operand.vmem [shape: f32[4,1], index: 4, kind: output, shape index: {1}]
  %s5 = inlined_call_operand.vmem [shape: f32[4,1], index: 5, kind: output, shape index: {2}]
  %6 = xla_tuple %s3, %s4, %s5
  %s7 = sld [smem:[#allocation0]]
  $region42: #{tpu_custom_call.1} parent=0
    _
  %s9 = ssub.s32 1, %s7
  %s10 = scalar_select 0, %s9, %s7
  $region1: #{tpu_custom_call.1} parent=0
    #allocation2 [shape = 'u8[8192]{0}', space=vmem, size = 0x2000, scoped, tag = 'input window, operand 0, single buffered']
    #allocation3 [shape = 's32[1]{0}', space=sflag, size = 0x4, scoped, tag = 'scoped memory for tpu_custom_call.1']
    #allocation4 [shape = 's32[1]{0}', space=sflag, size = 0x4, scoped, tag = 'scoped memory for tpu_custom_call.1']
    #allocation5 [shape = 'u8[8192]{0}', space=vmem, size = 0x2000, scoped, tag = 'output window, operand 0, single buffered']
    %11 = vsyncpa [#allocation3], 0
    %12 = vsyncpa [#allocation4], 0
    // Predicated region
    $region2: #{tpu_custom_call.1} parent=1 // pred_check
      _
    $region3: #{tpu_custom_call.1} parent=1 // pred_check_branch
      %14 = sbr.rel (0) target = $region5
    $region4: #{tpu_custom_call.1} parent=1 // pred_region
      %s16 = ssub.s32 256, 256
      %17 = vsyncadd [#allocation3], %s16
      %s18 = sshll.u32 [#allocation2], 4
      %s19 = int_to_ptr.vmem [resolvable:$true] %s18
      %24 = dma.hbm_to_vmem [thread:$0]  %s0, 256, %s19, [#allocation3], 128, 128, 8
    $region5: #{tpu_custom_call.1} parent=1 // pred_fallthru
      _
    // Predicated region
    $region6: #{tpu_custom_call.1} parent=1 // pred_check
      _
    $region7: #{tpu_custom_call.1} parent=1 // pred_check_branch
      %26 = sbr.rel (0) target = $region9
    $region8: #{tpu_custom_call.1} parent=1 // pred_region
      _
    $region9: #{tpu_custom_call.1} parent=1 // pred_fallthru
      _
    // Predicated region
    $region10: #{tpu_custom_call.1} parent=1 // pred_check
      _
    $region11: #{tpu_custom_call.1} parent=1 // pred_check_branch
      %28 = sbr.rel (0) target = $region13
    $region12: #{tpu_custom_call.1} parent=1 // pred_region
      _
    $region13: #{tpu_custom_call.1} parent=1 // pred_fallthru
      _
    // Predicated region
    $region14: #{tpu_custom_call.1} parent=1 // pred_check
      _
    $region15: #{tpu_custom_call.1} parent=1 // pred_check_branch
      %30 = sbr.rel (0) target = $region17
    $region16: #{tpu_custom_call.1} parent=1 // pred_region
      %31 = dma.done [#allocation3], 256
    $region17: #{tpu_custom_call.1} parent=1 // pred_fallthru
      _
    %v32 = vld [vmem:[#allocation2] sm:$0xff]
    %v33 = vld [vmem:[#allocation2 + $0x8] sm:$0xff]
    %v36 = vcombine.high %v32, %v32
    %v37 = vcombine.high %v33, %v33
    %vm40 = vcmask 1043456
    %v41 = vsel %vm40, %v32, 0.0
    %v42 = vsel %vm40, %v36, 0.0
    %v43 = vadd.f32 %v41, %v42
    %44 = vadd.xlane.f32.xlu0 %v43
    %v45 = vpop.xlane.xlu0 %44
    %v46 = vsel %vm40, %v33, 0.0
    %v47 = vsel %vm40, %v37, 0.0
    %v48 = vadd.f32 %v46, %v47
    %49 = vadd.xlane.f32.xlu0 %v48
    %v50 = vpop.xlane.xlu0 %49
    %v51 = vsel %vm40, %v45, 0.0
    %v52 = vsel %vm40, %v50, 0.0
    %v53 = vadd.f32 %v51, %v52
    %v54 = vmul.f32 %v53, 0.001953125
    %v57 = vunpack.c.l.s4 839922192
    %v58 = vunpack.c.0.s8 %v57
    %v59 = vlaneseq
    %v60 = vshrl.u32 %v59, 7
    %v61 = vsub.s32 %v58, %v60
    %v62 = vrot.slane %v54, %v61
    %v64 = vsub.f32 %v32, %v62
    %v65 = vsub.f32 %v33, %v62
    %v66 = vmul.f32 %v64, %v64
    %v67 = vmul.f32 %v65, %v65
    %v70 = vcombine.high %v66, %v66
    %v71 = vcombine.high %v67, %v67
    %v74 = vsel %vm40, %v66, 0.0
    %v75 = vsel %vm40, %v70, 0.0
    %v76 = vadd.f32 %v74, %v75
    %77 = vadd.xlane.f32.xlu0 %v76
    %v78 = vpop.xlane.xlu0 %77
    %v79 = vsel %vm40, %v67, 0.0
    %v80 = vsel %vm40, %v71, 0.0
    %v81 = vadd.f32 %v79, %v80
    %82 = vadd.xlane.f32.xlu0 %v81
    %v83 = vpop.xlane.xlu0 %82
    %v84 = vsel %vm40, %v78, 0.0
    %v85 = vsel %vm40, %v83, 0.0
    %v86 = vadd.f32 %v84, %v85
    %v87 = vmul.f32 %v86, 0.001953125
    %v88 = vld [vmem:[%s1] sm:$0xf]
    %v89 = vadd.f32 %v87, 1e-05
    %v90 = vrsqrt.pop %v89
    %v91 = vmul.f32 %v88, %v90
    %93 = vset.pattern.permute.xlu0 0
    %94 = vperm.xlu0 %93, %v91
    %v95 = vpop.permute.xlu0 %94
    %v97 = vunpack.c.l.s4 839922192
    %v98 = vunpack.c.0.s8 %v97
    %v99 = vlaneseq
    %v100 = vshrl.u32 %v99, 7
    %v101 = vsub.s32 %v98, %v100
    %v102 = vrot.slane %v95, %v101
    %v104 = vmul.f32 %v64, %v102
    %v105 = vmul.f32 %v65, %v102
    %v106 = vld [vmem:[%s2] sm:$0xf]
    %108 = vset.pattern.permute.xlu0 0
    %109 = vperm.xlu0 %108, %v106
    %v110 = vpop.permute.xlu0 %109
    %v112 = vunpack.c.l.s4 839922192
    %v113 = vunpack.c.0.s8 %v112
    %v114 = vlaneseq
    %v115 = vshrl.u32 %v114, 7
    %v116 = vsub.s32 %v113, %v115
    %v117 = vrot.slane %v110, %v116
    %v119 = vadd.f32 %v104, %v117
    %v120 = vadd.f32 %v105, %v117
    %121 = vst [vmem:[#allocation5] sm:$0xff] %v119
    %122 = vst [vmem:[#allocation5 + $0x8] sm:$0xff] %v120
    %vm123 = vcmask 3072
    %124 = vst.msk [vmem:[%s4] sm:$0xf] %vm123, %v54
    %125 = vst.msk [vmem:[%s5] sm:$0xf] %vm123, %v87
    // Predicated region
    $region18: #{tpu_custom_call.1} parent=1 // pred_check
      _
    $region19: #{tpu_custom_call.1} parent=1 // pred_check_branch
      %127 = sbr.rel (0) target = $region21
    $region20: #{tpu_custom_call.1} parent=1 // pred_region
      %s129 = ssub.s32 256, 256
      %130 = vsyncadd [#allocation4], %s129
      %s131 = sshll.u32 [#allocation5], 4
      %s132 = int_to_ptr.vmem [resolvable:$true] %s131
      %137 = dma.vmem_to_hbm [thread:$0]  %s132, 256, %s3, [#allocation4], 128, 128, 8
    $region21: #{tpu_custom_call.1} parent=1 // pred_fallthru
      _
    // Predicated region
    $region22: #{tpu_custom_call.1} parent=1 // pred_check
      _
    $region23: #{tpu_custom_call.1} parent=1 // pred_check_branch
      %139 = sbr.rel (0) target = $region25
    $region24: #{tpu_custom_call.1} parent=1 // pred_region
      _
    $region25: #{tpu_custom_call.1} parent=1 // pred_fallthru
      _
    // Predicated region
    $region26: #{tpu_custom_call.1} parent=1 // pred_check
      _
    $region27: #{tpu_custom_call.1} parent=1 // pred_check_branch
      %141 = sbr.rel (0) target = $region29
    $region28: #{tpu_custom_call.1} parent=1 // pred_region
      _
    $region29: #{tpu_custom_call.1} parent=1 // pred_fallthru
      _
    // Predicated region
    $region30: #{tpu_custom_call.1} parent=1 // pred_check
      _
    $region31: #{tpu_custom_call.1} parent=1 // pred_check_branch
      %143 = sbr.rel (0) target = $region33
    $region32: #{tpu_custom_call.1} parent=1 // pred_region
      %144 = dma.done [#allocation4], 256
    $region33: #{tpu_custom_call.1} parent=1 // pred_fallthru
      _
    // Predicated region
    $region34: #{tpu_custom_call.1} parent=1 // pred_check
      _
    $region35: #{tpu_custom_call.1} parent=1 // pred_check_branch
      %146 = sbr.rel (0) target = $region37
    $region36: #{tpu_custom_call.1} parent=1 // pred_region
      _
    $region37: #{tpu_custom_call.1} parent=1 // pred_fallthru
      _
    // Predicated region
    $region38: #{tpu_custom_call.1} parent=1 // pred_check
      _
    $region39: #{tpu_custom_call.1} parent=1 // pred_check_branch
      %148 = sbr.rel (0) target = $region41
    $region40: #{tpu_custom_call.1} parent=1 // pred_region
      _
    $region41: #{tpu_custom_call.1} parent=1 // pred_fallthru
      _
    %149 = vsyncpa [#allocation3], 1
    %150 = vsyncpa [#allocation4], 1

</llo_original>
